<compile_context>
chip_gen: v7x
topology: tpu7x:2x2x1
jax: 0.10.0
libtpu: 0.0.40
codegen_flags: <defaults>
</compile_context>

<pallas_src>
import functools

import jax
import jax.numpy as jnp
from jax.experimental import pallas as pl
from jax.experimental.pallas import tpu as pltpu

EPS = 1e-5
_FUSED_X_BYTES = 4 * 1024 * 1024   # fused single-block path only if f32 x <= 4 MiB
_TILE_X_BYTES = 2 * 1024 * 1024    # target per-tile x bytes for the streaming path


# ----------------------------------------------------------------------------
# Fused single-block kernel (small inputs; x read exactly once from HBM).
# ----------------------------------------------------------------------------
def _fused_kernel(x_ref, sbn_ref, sln_ref, bias_ref, o_ref):
    x = x_ref[...].astype(jnp.float32)                              # (N, F)
    n, f = x.shape

    # BatchNorm stats: reduce over the batch (sublane) axis, per feature.
    mean_b = jnp.sum(x, axis=0, keepdims=True) * (1.0 / n)          # (1, F)
    var_b = jnp.sum(x * x, axis=0, keepdims=True) * (1.0 / n) - mean_b * mean_b
    rb = jax.lax.rsqrt(jnp.maximum(var_b, 0.0) + EPS)

    # LayerNorm stats: reduce over the feature (lane) axis, per row.
    mean_l = jnp.sum(x, axis=-1, keepdims=True) * (1.0 / f)         # (N, 1)
    var_l = jnp.sum(x * x, axis=-1, keepdims=True) * (1.0 / f) - mean_l * mean_l
    rl = jax.lax.rsqrt(jnp.maximum(var_l, 0.0) + EPS)

    # sbn = alpha*g_bn, sln = (1-alpha)*g_ln, bias = alpha*b_bn + (1-alpha)*b_ln
    out = (x - mean_b) * (rb * sbn_ref[...]) \
        + (x - mean_l) * rl * sln_ref[...] \
        + bias_ref[...]
    o_ref[...] = out.astype(o_ref.dtype)


# ----------------------------------------------------------------------------
# Two-pass path: pass 1 — per-feature sum / sum-of-squares over the batch.
# ----------------------------------------------------------------------------
def _bn_stats_kernel(x_ref, sum_ref, sumsq_ref, *, tile_n, n_rows, needs_mask):
    i = pl.program_id(0)

    @pl.when(i == 0)
    def _():
        sum_ref[...] = jnp.zeros_like(sum_ref)
        sumsq_ref[...] = jnp.zeros_like(sumsq_ref)

    x = x_ref[...].astype(jnp.float32)                              # (tile_n, F)
    if needs_mask:  # last tile may extend past the batch; zero out padded rows
        row = i * tile_n + jax.lax.broadcasted_iota(jnp.int32, x.shape, 0)
        x = jnp.where(row < n_rows, x, 0.0)
    sum_ref[...] += jnp.sum(x, axis=0, keepdims=True)
    sumsq_ref[...] += jnp.sum(x * x, axis=0, keepdims=True)


# ----------------------------------------------------------------------------
# Two-pass path: pass 2 — streaming apply (LN per row + pre-folded BN affine).
# ----------------------------------------------------------------------------
def _apply_kernel(x_ref, bn_scale_ref, ln_scale_ref, bias_ref, o_ref):
    x = x_ref[...].astype(jnp.float32)                              # (tile_n, F)
    f = x.shape[-1]
    mean_l = jnp.sum(x, axis=-1, keepdims=True) * (1.0 / f)
    var_l = jnp.sum(x * x, axis=-1, keepdims=True) * (1.0 / f) - mean_l * mean_l
    rl = jax.lax.rsqrt(jnp.maximum(var_l, 0.0) + EPS)
    out = x * bn_scale_ref[...] + (x - mean_l) * rl * ln_scale_ref[...] + bias_ref[...]
    o_ref[...] = out.astype(o_ref.dtype)


def _pick_tile_n(n, f):
    # ~2 MiB of f32 x per tile, capped at 512 rows; the sublane block dim must be a
    # multiple of 8 unless a single tile covers the whole batch.
    rows = max(8, min(512, _TILE_X_BYTES // max(1, 4 * f)))
    rows = (rows // 8) * 8
    return n if n <= rows else rows


def combined_norm(x, g_bn, b_bn, g_ln, b_ln, alpha, *, tile_n=None):
    """x: (N, F). Parameter vectors: (F,). alpha: scalar. Returns (N, F) in x.dtype."""
    n, f = x.shape
    alpha = jnp.asarray(alpha, jnp.float32)
    g_bn = g_bn.reshape(1, f).astype(jnp.float32)
    b_bn = b_bn.reshape(1, f).astype(jnp.float32)
    g_ln = g_ln.reshape(1, f).astype(jnp.float32)
    b_ln = b_ln.reshape(1, f).astype(jnp.float32)

    # ---------------- fused single-block fast path (small x) -----------------
    if tile_n is None and n * f * 4 <= _FUSED_X_BYTES:
        sbn = alpha * g_bn                                  # alpha folded in wrapper
        sln = (1.0 - alpha) * g_ln
        bias = alpha * b_bn + (1.0 - alpha) * b_ln
        full = lambda shape: pl.BlockSpec(shape, lambda: (0,) * len(shape))
        return pl.pallas_call(
            _fused_kernel,
            out_shape=jax.ShapeDtypeStruct((n, f), x.dtype),
            grid_spec=pltpu.PrefetchScalarGridSpec(
                num_scalar_prefetch=0,
                grid=(),
                in_specs=[full((n, f)), full((1, f)), full((1, f)), full((1, f))],
                out_specs=full((n, f)),
            ),
        )(x, sbn, sln, bias)

    # ---------------- two-pass tiled path -------------------------------------
    if tile_n is None:
        tn = _pick_tile_n(n, f)
    else:
        tn = min(int(tile_n), n)
        if tn < n:
            tn = max(8, (tn // 8) * 8)
    grid_n = pl.cdiv(n, tn)

    # Pass 1: per-feature batch sum / sum-of-squares (resident accumulators).
    stats_kernel = functools.partial(
        _bn_stats_kernel, tile_n=tn, n_rows=n, needs_mask=(n % tn != 0))
    x_sum, x_sumsq = pl.pallas_call(
        stats_kernel,
        out_shape=(jax.ShapeDtypeStruct((1, f), jnp.float32),
                   jax.ShapeDtypeStruct((1, f), jnp.float32)),
        grid_spec=pltpu.PrefetchScalarGridSpec(
            num_scalar_prefetch=0,
            grid=(grid_n,),
            in_specs=[pl.BlockSpec((tn, f), lambda i: (i, 0))],
            out_specs=[pl.BlockSpec((1, f), lambda i: (0, 0)),
                       pl.BlockSpec((1, f), lambda i: (0, 0))],
        ),
        compiler_params=pltpu.CompilerParams(
            dimension_semantics=("arbitrary",)),
    )(x)

    # Fold BN stats + affine params + alpha once (hoisted out of the per-tile body).
    mean_b = x_sum * (1.0 / n)
    var_b = jnp.maximum(x_sumsq * (1.0 / n) - mean_b * mean_b, 0.0)
    rb = jax.lax.rsqrt(var_b + EPS)                                 # (1, F)
    bn_scale = alpha * g_bn * rb                                    # (1, F)
    ln_scale = (1.0 - alpha) * g_ln                                 # (1, F)
    bias = alpha * (b_bn - mean_b * g_bn * rb) + (1.0 - alpha) * b_ln

    # Pass 2: streaming apply, double-buffered tiles over N (megacore-parallel).
    return pl.pallas_call(
        _apply_kernel,
        out_shape=jax.ShapeDtypeStruct((n, f), x.dtype),
        grid_spec=pltpu.PrefetchScalarGridSpec(
            num_scalar_prefetch=0,
            grid=(grid_n,),
            in_specs=[pl.BlockSpec((tn, f), lambda i: (i, 0)),
                      pl.BlockSpec((1, f), lambda i: (0, 0)),
                      pl.BlockSpec((1, f), lambda i: (0, 0)),
                      pl.BlockSpec((1, f), lambda i: (0, 0))],
            out_specs=pl.BlockSpec((tn, f), lambda i: (i, 0)),
        ),
        compiler_params=pltpu.CompilerParams(
            dimension_semantics=("parallel",)),
    )(x, bn_scale, ln_scale, bias)


# ----------------------------------------------------------------------------
# Pure-JAX reference (matches PyTorch training-mode forward).
# ----------------------------------------------------------------------------
def combined_norm_ref(x, g_bn, b_bn, g_ln, b_ln, alpha):
    x = x.astype(jnp.float32)
    mean_b = jnp.mean(x, axis=0, keepdims=True)
    var_b = jnp.mean((x - mean_b) ** 2, axis=0, keepdims=True)
    bn = (x - mean_b) / jnp.sqrt(var_b + EPS) * g_bn[None, :] + b_bn[None, :]
    mean_l = jnp.mean(x, axis=-1, keepdims=True)
    var_l = jnp.mean((x - mean_l) ** 2, axis=-1, keepdims=True)
    ln = (x - mean_l) / jnp.sqrt(var_l + EPS) * g_ln[None, :] + b_ln[None, :]
    return alpha * bn + (1.0 - alpha) * ln


if __name__ == "__main__":
    key = jax.random.PRNGKey(0)
    kx, kg1, kb1, kg2, kb2 = jax.random.split(key, 5)

    F = 32                                            # hidden size (module `size`)
    g_bn = 1.0 + 0.1 * jax.random.normal(kg1, (F,), dtype=jnp.float32)
    b_bn = 0.1 * jax.random.normal(kb1, (F,), dtype=jnp.float32)
    g_ln = 1.0 + 0.1 * jax.random.normal(kg2, (F,), dtype=jnp.float32)
    b_ln = 0.1 * jax.random.normal(kb2, (F,), dtype=jnp.float32)
    alpha = jnp.float32(0.5)                          # nn.Parameter(torch.tensor(0.5))

    # 1) fused single-block path (default for small x)
    N = 24
    x = jax.random.normal(kx, (N, F), dtype=jnp.float32)
    out = jax.block_until_ready(combined_norm(x, g_bn, b_bn, g_ln, b_ln, alpha))
    ref = combined_norm_ref(x, g_bn, b_bn, g_ln, b_ln, alpha)
    assert out.shape == (N, F) and out.dtype == x.dtype
    assert jnp.allclose(out, ref, atol=1e-4, rtol=1e-4)

    # 2) two-pass tiled path, even grid (forced small tile to exercise the pipeline)
    out2 = jax.block_until_ready(
        combined_norm(x, g_bn, b_bn, g_ln, b_ln, alpha, tile_n=8))
    assert jnp.allclose(out2, ref, atol=1e-4, rtol=1e-4)

    # 3) two-pass tiled path with a partial (masked) last tile
    N3 = 20
    x3 = jax.random.normal(jax.random.PRNGKey(7), (N3, F), dtype=jnp.float32)
    out3 = jax.block_until_ready(
        combined_norm(x3, g_bn, b_bn, g_ln, b_ln, alpha, tile_n=8))
    ref3 = combined_norm_ref(x3, g_bn, b_bn, g_ln, b_ln, alpha)
    assert out3.shape == (N3, F) and out3.dtype == x3.dtype
    assert jnp.allclose(out3, ref3, atol=1e-4, rtol=1e-4)

    print("KERNEL_OK")
</pallas_src>

<mosaic_0001>
module attributes {stable_mosaic.version = 11 : i64} {
  func.func @_fused_kernel(%arg0: memref<24x32xf32, #tpu.memory_space<vmem>>, %arg1: memref<1x32xf32, #tpu.memory_space<vmem>>, %arg2: memref<1x32xf32, #tpu.memory_space<vmem>>, %arg3: memref<1x32xf32, #tpu.memory_space<vmem>>, %arg4: memref<24x32xf32, #tpu.memory_space<vmem>>) attributes {dimension_semantics = [], scalar_prefetch = 0 : i64, scratch_operands = 0 : i64, tpu.core_type = #tpu.core_type<tc>} {
    %c0 = arith.constant 0 : index
    %c0_0 = arith.constant 0 : index
    %0 = vector.load %arg0[%c0, %c0_0] : memref<24x32xf32, #tpu.memory_space<vmem>>, vector<24x32xf32>
    %cst = arith.constant dense<0.000000e+00> : vector<32xf32>
    %1 = vector.multi_reduction <add>, %0, %cst [0] : vector<24x32xf32> to vector<32xf32>
    %2 = vector.shape_cast %1 : vector<32xf32> to vector<1x32xf32>
    %cst_1 = arith.constant 0.0416666679 : f32
    %3 = vector.broadcast %cst_1 : f32 to vector<1x32xf32>
    %4 = arith.mulf %2, %3 : vector<1x32xf32>
    %5 = arith.mulf %0, %0 : vector<24x32xf32>
    %cst_2 = arith.constant dense<0.000000e+00> : vector<32xf32>
    %6 = vector.multi_reduction <add>, %5, %cst_2 [0] : vector<24x32xf32> to vector<32xf32>
    %7 = vector.shape_cast %6 : vector<32xf32> to vector<1x32xf32>
    %cst_3 = arith.constant 0.0416666679 : f32
    %8 = vector.broadcast %cst_3 : f32 to vector<1x32xf32>
    %9 = arith.mulf %7, %8 : vector<1x32xf32>
    %10 = arith.mulf %4, %4 : vector<1x32xf32>
    %11 = arith.subf %9, %10 : vector<1x32xf32>
    %cst_4 = arith.constant 0.000000e+00 : f32
    %12 = vector.broadcast %cst_4 : f32 to vector<1x32xf32>
    %13 = arith.maximumf %11, %12 : vector<1x32xf32>
    %cst_5 = arith.constant 9.99999974E-6 : f32
    %14 = vector.broadcast %cst_5 : f32 to vector<1x32xf32>
    %15 = arith.addf %13, %14 : vector<1x32xf32>
    %16 = math.rsqrt %15 : vector<1x32xf32>
    %cst_6 = arith.constant dense<0.000000e+00> : vector<24xf32>
    %17 = vector.multi_reduction <add>, %0, %cst_6 [1] : vector<24x32xf32> to vector<24xf32>
    %18 = vector.shape_cast %17 : vector<24xf32> to vector<24x1xf32>
    %cst_7 = arith.constant 3.125000e-02 : f32
    %19 = vector.broadcast %cst_7 : f32 to vector<24x1xf32>
    %20 = arith.mulf %18, %19 : vector<24x1xf32>
    %21 = arith.mulf %0, %0 : vector<24x32xf32>
    %cst_8 = arith.constant dense<0.000000e+00> : vector<24xf32>
    %22 = vector.multi_reduction <add>, %21, %cst_8 [1] : vector<24x32xf32> to vector<24xf32>
    %23 = vector.shape_cast %22 : vector<24xf32> to vector<24x1xf32>
    %cst_9 = arith.constant 3.125000e-02 : f32
    %24 = vector.broadcast %cst_9 : f32 to vector<24x1xf32>
    %25 = arith.mulf %23, %24 : vector<24x1xf32>
    %26 = arith.mulf %20, %20 : vector<24x1xf32>
    %27 = arith.subf %25, %26 : vector<24x1xf32>
    %cst_10 = arith.constant 0.000000e+00 : f32
    %28 = vector.broadcast %cst_10 : f32 to vector<24x1xf32>
    %29 = arith.maximumf %27, %28 : vector<24x1xf32>
    %cst_11 = arith.constant 9.99999974E-6 : f32
    %30 = vector.broadcast %cst_11 : f32 to vector<24x1xf32>
    %31 = arith.addf %29, %30 : vector<24x1xf32>
    %32 = math.rsqrt %31 : vector<24x1xf32>
    %33 = vector.broadcast %4 : vector<1x32xf32> to vector<24x32xf32>
    %34 = arith.subf %0, %33 : vector<24x32xf32>
    %c0_12 = arith.constant 0 : index
    %c0_13 = arith.constant 0 : index
    %35 = vector.load %arg1[%c0_12, %c0_13] : memref<1x32xf32, #tpu.memory_space<vmem>>, vector<1x32xf32>
    %36 = arith.mulf %16, %35 : vector<1x32xf32>
    %37 = vector.broadcast %36 : vector<1x32xf32> to vector<24x32xf32>
    %38 = arith.mulf %34, %37 : vector<24x32xf32>
    %39 = vector.broadcast %20 : vector<24x1xf32> to vector<24x32xf32>
    %40 = arith.subf %0, %39 : vector<24x32xf32>
    %41 = vector.broadcast %32 : vector<24x1xf32> to vector<24x32xf32>
    %42 = arith.mulf %40, %41 : vector<24x32xf32>
    %c0_14 = arith.constant 0 : index
    %c0_15 = arith.constant 0 : index
    %43 = vector.load %arg2[%c0_14, %c0_15] : memref<1x32xf32, #tpu.memory_space<vmem>>, vector<1x32xf32>
    %44 = vector.broadcast %43 : vector<1x32xf32> to vector<24x32xf32>
    %45 = arith.mulf %42, %44 : vector<24x32xf32>
    %46 = arith.addf %38, %45 : vector<24x32xf32>
    %c0_16 = arith.constant 0 : index
    %c0_17 = arith.constant 0 : index
    %47 = vector.load %arg3[%c0_16, %c0_17] : memref<1x32xf32, #tpu.memory_space<vmem>>, vector<1x32xf32>
    %48 = vector.broadcast %47 : vector<1x32xf32> to vector<24x32xf32>
    %49 = arith.addf %46, %48 : vector<24x32xf32>
    %c0_18 = arith.constant 0 : index
    %c0_19 = arith.constant 0 : index
    %50 = vector.load %arg4[%c0_18, %c0_19] : memref<24x32xf32, #tpu.memory_space<vmem>>, vector<24x32xf32>
    tpu.vector_store %arg4[%c0_18, %c0_19], %49 {strides = array<i32>} : memref<24x32xf32, #tpu.memory_space<vmem>>, vector<24x32xf32>,
    return
  }
}

</mosaic_0001>

<llo_original>
// kernel: tpu_custom_call.1
$region0: #{tpu_custom_call.1}
  #allocation0 [shape = 'u32[]', space=smem, size = 0x4, offset = 0x4, fixed_abs, tag = 'smem constant byte address 0x4 - core index']
  #allocation1 [shape = 'u32[144,128]{1,0:T(1,128)}', space=vmem, size = 0x12000, scoped, tag = 'internal scratch']
  %s0 = inlined_call_operand.hbm [shape: f32[24,32], index: 0, kind: input, shape index: {}]
  %s1 = inlined_call_operand.vmem [shape: f32[1,32], index: 1, kind: input, shape index: {}]
  %s2 = inlined_call_operand.vmem [shape: f32[1,32], index: 2, kind: input, shape index: {}]
  %s3 = inlined_call_operand.vmem [shape: f32[1,32], index: 3, kind: input, shape index: {}]
  %s4 = inlined_call_operand.hbm [shape: f32[24,32], index: 4, kind: output, shape index: {}]
  %s5 = sld [smem:[#allocation0]]
  $region30: #{tpu_custom_call.1} parent=0
    _
  %s7 = ssub.s32 1, %s5
  %s8 = scalar_select 0, %s7, %s5
  $region1: #{tpu_custom_call.1} parent=0
    #allocation2 [shape = 'u8[12288]{0}', space=vmem, size = 0x3000, scoped, tag = 'input window, operand 0, single buffered']
    #allocation3 [shape = 's32[1]{0}', space=sflag, size = 0x4, scoped, tag = 'scoped memory for tpu_custom_call.1']
    #allocation4 [shape = 's32[1]{0}', space=sflag, size = 0x4, scoped, tag = 'scoped memory for tpu_custom_call.1']
    #allocation5 [shape = 'u8[12288]{0}', space=vmem, size = 0x3000, scoped, tag = 'output window, operand 0, single buffered']
    %9 = vsyncpa [#allocation3], 0
    %10 = vsyncpa [#allocation4], 0
    // Predicated region
    $region2: #{tpu_custom_call.1} parent=1 // pred_check
      _
    $region3: #{tpu_custom_call.1} parent=1 // pred_check_branch
      %12 = sbr.rel (0) target = $region5
    $region4: #{tpu_custom_call.1} parent=1 // pred_region
      %s14 = ssub.s32 384, 384
      %15 = vsyncadd [#allocation3], %s14
      %s16 = sshll.u32 [#allocation2], 4
      %s17 = int_to_ptr.vmem [resolvable:$true] %s16
      %22 = dma.hbm_to_vmem [thread:$0]  %s0, 384, %s17, [#allocation3], 128, 128, 8
    $region5: #{tpu_custom_call.1} parent=1 // pred_fallthru
      _
    // Predicated region
    $region6: #{tpu_custom_call.1} parent=1 // pred_check
      _
    $region7: #{tpu_custom_call.1} parent=1 // pred_check_branch
      %24 = sbr.rel (0) target = $region9
    $region8: #{tpu_custom_call.1} parent=1 // pred_region
      _
    $region9: #{tpu_custom_call.1} parent=1 // pred_fallthru
      _
    // Predicated region
    $region10: #{tpu_custom_call.1} parent=1 // pred_check
      _
    $region11: #{tpu_custom_call.1} parent=1 // pred_check_branch
      %26 = sbr.rel (0) target = $region13
    $region12: #{tpu_custom_call.1} parent=1 // pred_region
      _
    $region13: #{tpu_custom_call.1} parent=1 // pred_fallthru
      _
    // Predicated region
    $region14: #{tpu_custom_call.1} parent=1 // pred_check
      _
    $region15: #{tpu_custom_call.1} parent=1 // pred_check_branch
      %28 = sbr.rel (0) target = $region17
    $region16: #{tpu_custom_call.1} parent=1 // pred_region
      _
    $region17: #{tpu_custom_call.1} parent=1 // pred_fallthru
      _
    // Predicated region
    $region18: #{tpu_custom_call.1} parent=1 // pred_check
      _
    $region19: #{tpu_custom_call.1} parent=1 // pred_check_branch
      %30 = sbr.rel (0) target = $region21
    $region20: #{tpu_custom_call.1} parent=1 // pred_region
      %31 = dma.done [#allocation3], 384
    $region21: #{tpu_custom_call.1} parent=1 // pred_fallthru
      _
    %v32 = vld [vmem:[#allocation2] sm:$0xff]
    %v33 = vld [vmem:[#allocation2 + $0x8] sm:$0xff]
    %v34 = vld [vmem:[#allocation2 + $0x10] sm:$0xff]
    %vm35 = vcmask 261120
    %v36 = vsel %vm35, %v32, 0.0
    %v37 = vsel %vm35, %v33, 0.0
    %v38 = vadd.f32 %v36, %v37
    %v39 = vsel %vm35, %v34, 0.0
    %v40 = vadd.f32 %v38, %v39
    %v41 = vrot.slane %v40, 4
    %v42 = vadd.f32 %v40, %v41
    %v43 = vrot.slane %v42, 2
    %v44 = vadd.f32 %v42, %v43
    %v45 = vrot.slane %v44, 1
    %v46 = vadd.f32 %v44, %v45
    %v47 = vmul.f32 %v46, 0.041666668
    %v48 = vmul.f32 %v32, %v32
    %v49 = vmul.f32 %v33, %v33
    %v50 = vmul.f32 %v34, %v34
    %v51 = vsel %vm35, %v48, 0.0
    %v52 = vsel %vm35, %v49, 0.0
    %v53 = vadd.f32 %v51, %v52
    %v54 = vsel %vm35, %v50, 0.0
    %v55 = vadd.f32 %v53, %v54
    %v56 = vrot.slane %v55, 4
    %v57 = vadd.f32 %v55, %v56
    %v58 = vrot.slane %v57, 2
    %v59 = vadd.f32 %v57, %v58
    %v60 = vrot.slane %v59, 1
    %v61 = vadd.f32 %v59, %v60
    %v62 = vmul.f32 %v61, 0.041666668
    %v63 = vmul.f32 %v47, %v47
    %v64 = vsub.f32 %v62, %v63
    %v65 = vmax.f32 %v64, 0.0
    %v66 = vadd.f32 %v65, 1e-05
    %v67 = vrsqrt.pop %v66
    %68 = vadd.xlane.f32.xlu0 %v36
    %v69 = vpop.xlane.xlu0 %68
    %70 = vadd.xlane.f32.xlu0 %v37
    %v71 = vpop.xlane.xlu0 %70
    %72 = vadd.xlane.f32.xlu0 %v39
    %v73 = vpop.xlane.xlu0 %72
    %v74 = vmul.f32 %v69, 0.03125
    %v75 = vmul.f32 %v71, 0.03125
    %v76 = vmul.f32 %v73, 0.03125
    %77 = vadd.xlane.f32.xlu0 %v51
    %v78 = vpop.xlane.xlu0 %77
    %79 = vadd.xlane.f32.xlu0 %v52
    %v80 = vpop.xlane.xlu0 %79
    %81 = vadd.xlane.f32.xlu0 %v54
    %v82 = vpop.xlane.xlu0 %81
    %v83 = vmul.f32 %v78, 0.03125
    %v84 = vmul.f32 %v80, 0.03125
    %v85 = vmul.f32 %v82, 0.03125
    %v86 = vmul.f32 %v74, %v74
    %v87 = vmul.f32 %v75, %v75
    %v88 = vmul.f32 %v76, %v76
    %v89 = vsub.f32 %v83, %v86
    %v90 = vsub.f32 %v84, %v87
    %v91 = vsub.f32 %v85, %v88
    %v92 = vmax.f32 %v89, 0.0
    %v93 = vmax.f32 %v90, 0.0
    %v94 = vmax.f32 %v91, 0.0
    %v95 = vadd.f32 %v92, 1e-05
    %v96 = vadd.f32 %v93, 1e-05
    %v97 = vadd.f32 %v94, 1e-05
    %v98 = vrsqrt.pop %v95
    %v99 = vrsqrt.pop %v96
    %v100 = vrsqrt.pop %v97
    %v101 = vsub.f32 %v32, %v47
    %v102 = vsub.f32 %v33, %v47
    %v103 = vsub.f32 %v34, %v47
    %v104 = vld [vmem:[%s1] sm:$0x1]
    %v105 = vmul.f32 %v67, %v104
    %v106 = vlaneseq
    %v107 = vshrl.u32 %v106, 7
    %v108 = vsub.s32 0, %v107
    %v109 = vrot.slane %v105, %v108
    %v110 = vmul.f32 %v101, %v109
    %v111 = vmul.f32 %v102, %v109
    %v112 = vmul.f32 %v103, %v109
    %v113 = vsub.f32 %v32, %v74
    %v114 = vsub.f32 %v33, %v75
    %v115 = vsub.f32 %v34, %v76
    %v116 = vmul.f32 %v113, %v98
    %v117 = vmul.f32 %v114, %v99
    %v118 = vmul.f32 %v115, %v100
    %v119 = vld [vmem:[%s2] sm:$0x1]
    %v121 = vlaneseq
    %v122 = vshrl.u32 %v121, 7
    %v123 = vsub.s32 0, %v122
    %v124 = vrot.slane %v119, %v123
    %v126 = vmul.f32 %v116, %v124
    %v127 = vmul.f32 %v117, %v124
    %v128 = vmul.f32 %v118, %v124
    %v129 = vadd.f32 %v110, %v126
    %v130 = vadd.f32 %v111, %v127
    %v131 = vadd.f32 %v112, %v128
    %v132 = vld [vmem:[%s3] sm:$0x1]
    %v134 = vlaneseq
    %v135 = vshrl.u32 %v134, 7
    %v136 = vsub.s32 0, %v135
    %v137 = vrot.slane %v132, %v136
    %v139 = vadd.f32 %v129, %v137
    %v140 = vadd.f32 %v130, %v137
    %v141 = vadd.f32 %v131, %v137
    %142 = vst.msk [vmem:[#allocation5] sm:$0xff] %vm35, %v139
    %143 = vst.msk [vmem:[#allocation5 + $0x8] sm:$0xff] %vm35, %v140
    %144 = vst.msk [vmem:[#allocation5 + $0x10] sm:$0xff] %vm35, %v141
    // Predicated region
    $region22: #{tpu_custom_call.1} parent=1 // pred_check
      _
    $region23: #{tpu_custom_call.1} parent=1 // pred_check_branch
      %146 = sbr.rel (0) target = $region25
    $region24: #{tpu_custom_call.1} parent=1 // pred_region
      %s148 = ssub.s32 384, 384
      %149 = vsyncadd [#allocation4], %s148
      %s150 = sshll.u32 [#allocation5], 4
      %s151 = int_to_ptr.vmem [resolvable:$true] %s150
      %156 = dma.vmem_to_hbm [thread:$0]  %s151, 384, %s4, [#allocation4], 128, 128, 8
    $region25: #{tpu_custom_call.1} parent=1 // pred_fallthru
      _
    // Predicated region
    $region26: #{tpu_custom_call.1} parent=1 // pred_check
      _
    $region27: #{tpu_custom_call.1} parent=1 // pred_check_branch
      %158 = sbr.rel (0) target = $region29
    $region28: #{tpu_custom_call.1} parent=1 // pred_region
      %159 = dma.done [#allocation4], 384
    $region29: #{tpu_custom_call.1} parent=1 // pred_fallthru
      _
    %160 = vsyncpa [#allocation3], 1
    %161 = vsyncpa [#allocation4], 1

</llo_original>
